<compile_context>
chip_gen: v7x
topology: tpu7x:2x2x1
jax: 0.10.0
libtpu: 0.0.40
codegen_flags: <defaults>
</compile_context>

<pallas_src>
import functools

import jax
import jax.numpy as jnp
from jax.experimental import pallas as pl
from jax.experimental.pallas import tpu as pltpu


def _criterion_kernel(x_ref, t_ref, out_ref,
                      acc_ce, acc_inter, acc_pred, acc_tgt, *,
                      h_actual, needs_row_mask):
    # x_ref:  (1, C, TH, W) logits, input dtype
    # t_ref:  (1, 1, TH, W) int32 targets
    # out_ref:(1, 8, 128)   per-batch partial stats (written on last H tile)
    _, C, TH, W = x_ref.shape
    ht = pl.program_id(1)

    @pl.when(ht == 0)
    def _init():
        acc_ce[...] = jnp.zeros_like(acc_ce)
        acc_inter[...] = jnp.zeros_like(acc_inter)
        acc_pred[...] = jnp.zeros_like(acc_pred)
        acc_tgt[...] = jnp.zeros_like(acc_tgt)

    ch = [x_ref[0, c].astype(jnp.float32) for c in range(C)]   # C x (TH, W)
    tgt = t_ref[0, 0]                                          # (TH, W) int32

    if needs_row_mask:
        row = ht * TH + jax.lax.broadcasted_iota(jnp.int32, (TH, W), 0)
        valid = row < h_actual
        validf = valid.astype(jnp.float32)
        tgt = jnp.where(valid, tgt, -1)          # invalid rows match no class

    # channel max (stable log-sum-exp + argmax base)
    m = ch[0]
    for c in range(1, C):
        m = jnp.maximum(m, ch[c])

    # log-sum-exp over channels
    s = jnp.exp(ch[0] - m)
    for c in range(1, C):
        s = s + jnp.exp(ch[c] - m)
    lse = m + jnp.log(s)

    # logit of the target class (channel select via masked adds)
    logit_t = jnp.where(tgt == 0, ch[0], 0.0)
    for c in range(1, C):
        logit_t = logit_t + jnp.where(tgt == c, ch[c], 0.0)

    ce_pix = lse - logit_t
    if needs_row_mask:
        ce_pix = jnp.where(valid, ce_pix, 0.0)   # garbage rows contribute 0
    acc_ce[...] += ce_pix

    # argmax over channels, first max on ties (torch / jnp semantics)
    pred = jnp.zeros((TH, W), jnp.int32)
    for c in range(C - 1, -1, -1):
        pred = jnp.where(ch[c] == m, jnp.int32(c), pred)

    correct = pred == tgt            # invalid rows: tgt == -1 -> always False
    for c in range(C):
        t_c = (tgt == c).astype(jnp.float32)
        p_c = (pred == c).astype(jnp.float32)
        if needs_row_mask:
            p_c = p_c * validf
        acc_inter[c] += jnp.where(correct, t_c, 0.0)   # pred==c AND tgt==c
        acc_pred[c] += p_c
        acc_tgt[c] += t_c

    @pl.when(ht == pl.num_programs(1) - 1)
    def _finish():
        vals = [jnp.sum(acc_ce[...])]
        vals += [jnp.sum(acc_inter[c]) for c in range(C)]
        vals += [jnp.sum(acc_pred[c]) for c in range(C)]
        vals += [jnp.sum(acc_tgt[c]) for c in range(C)]
        lane = jax.lax.broadcasted_iota(jnp.int32, (8, 128), 1)
        sub = jax.lax.broadcasted_iota(jnp.int32, (8, 128), 0)
        slab = jnp.zeros((8, 128), jnp.float32)
        for k, v in enumerate(vals):
            slab = jnp.where((sub == k // 128) & (lane == k % 128), v, slab)
        out_ref[0] = slab


def _pick_tile_rows(h, w, c):
    """Rows per tile: ~8k-32k pixels, f32 logits slab kept <= ~2 MiB (v7x safe)."""
    target_px = max(1024, min(32768, (2 * 1024 * 1024) // (4 * max(c, 1))))
    th = target_px // max(w, 1)
    if th >= h or h <= 8:
        return h                       # full H (always a legal block extent)
    return min(max(8, (th // 8) * 8), (h // 8) * 8)


def criterion_loss(x, target, lambda_=1.0, epsilon=1e-6):
    """x: (N, C, H, W) float logits; target: (N, 1, H, W) or (N, H, W) ints."""
    N, C, H, W = x.shape
    assert 1 + 3 * C <= 8 * 128, "too many classes for the stats slab"
    t = target if target.ndim == 4 else target[:, None]
    t = t.astype(jnp.int32)            # no-op if already int32

    TH = _pick_tile_rows(H, W, C)
    HT = pl.cdiv(H, TH)
    needs_row_mask = (H % TH) != 0

    kernel = functools.partial(_criterion_kernel, h_actual=H,
                               needs_row_mask=needs_row_mask)
    stats_slabs = pl.pallas_call(
        kernel,
        out_shape=jax.ShapeDtypeStruct((N, 8, 128), jnp.float32),
        grid_spec=pltpu.PrefetchScalarGridSpec(
            num_scalar_prefetch=0,
            grid=(N, HT),
            in_specs=[pl.BlockSpec((1, C, TH, W), lambda n, h: (n, 0, h, 0)),
                      pl.BlockSpec((1, 1, TH, W), lambda n, h: (n, 0, h, 0))],
            out_specs=pl.BlockSpec((1, 8, 128), lambda n, h: (n, 0, 0)),
            scratch_shapes=[pltpu.VMEM((TH, W), jnp.float32),      # ce partials
                            pltpu.VMEM((C, TH, W), jnp.float32),   # intersection
                            pltpu.VMEM((C, TH, W), jnp.float32),   # |pred_c|
                            pltpu.VMEM((C, TH, W), jnp.float32)]), # |tgt_c|
        compiler_params=pltpu.CompilerParams(
            dimension_semantics=("parallel", "arbitrary")),
    )(x, t)

    # Tiny final combine in plain JAX (also merges per-core/per-batch partials).
    stats = jnp.sum(stats_slabs.reshape(N, 8 * 128), axis=0)
    ce = stats[0] / (N * H * W)
    inter = stats[1:1 + C]
    sets_sum = stats[1 + C:1 + 2 * C] + stats[1 + 2 * C:1 + 3 * C]
    sets_sum = jnp.where(sets_sum == 0.0, 2.0 * inter, sets_sum)
    dice = jnp.mean((2.0 * inter + epsilon) / (sets_sum + epsilon))
    return ce + lambda_ * (1.0 - dice)


def criterion_ref(x, target, lambda_=1.0, epsilon=1e-6):
    """Pure-JAX reference matching the PyTorch Criterion.forward semantics."""
    N, C, H, W = x.shape
    t = target.reshape(N, H, W).astype(jnp.int32)
    logp = jax.nn.log_softmax(x.astype(jnp.float32), axis=1)
    ce = -jnp.mean(jnp.take_along_axis(logp, t[:, None], axis=1))
    pred = jnp.argmax(x, axis=1)
    dice = 0.0
    for c in range(C):
        p = (pred == c).astype(jnp.float32)
        g = (t == c).astype(jnp.float32)
        inter = jnp.sum(p * g)
        ssum = jnp.sum(p) + jnp.sum(g)
        ssum = jnp.where(ssum == 0.0, 2.0 * inter, ssum)
        dice = dice + (2.0 * inter + epsilon) / (ssum + epsilon)
    dice = dice / C
    return ce + lambda_ * (1.0 - dice)


if __name__ == "__main__":
    key = jax.random.PRNGKey(0)
    kx, kt = jax.random.split(key)
    # Binary segmentation: the module hard-codes one_hot(argmax, 2), so C = 2.
    N, C, H, W = 2, 2, 16, 16
    x = jax.random.normal(kx, (N, C, H, W), dtype=jnp.float32)
    target = jax.random.randint(kt, (N, 1, H, W), 0, C, dtype=jnp.int32)

    loss = jax.jit(criterion_loss)(x, target)
    loss = jax.block_until_ready(loss)

    ref = criterion_ref(x, target, lambda_=1.0)
    assert abs(float(loss) - float(ref)) < 1e-4, (float(loss), float(ref))
    print("KERNEL_OK")
</pallas_src>

<mosaic_0001>
module attributes {stable_mosaic.version = 11 : i64} {
  func.func @_criterion_kernel(%arg0: i32, %arg1: i32, %arg2: memref<1x2x16x16xf32, #tpu.memory_space<vmem>>, %arg3: memref<1x1x16x16xi32, #tpu.memory_space<vmem>>, %arg4: memref<1x8x128xf32, #tpu.memory_space<vmem>>, %arg5: memref<16x16xf32, #tpu.memory_space<vmem>>, %arg6: memref<2x16x16xf32, #tpu.memory_space<vmem>>, %arg7: memref<2x16x16xf32, #tpu.memory_space<vmem>>, %arg8: memref<2x16x16xf32, #tpu.memory_space<vmem>>) attributes {dimension_semantics = [#tpu.dimension_semantics<parallel>, #tpu.dimension_semantics<arbitrary>], iteration_bounds = array<i64: 2, 1>, scalar_prefetch = 0 : i64, scratch_operands = 4 : i64, tpu.core_type = #tpu.core_type<tc>, window_params = [{transform_indices = @transform_0, window_bounds = array<i64: 1, 2, 16, 16>}, {transform_indices = @transform_1, window_bounds = array<i64: 1, 1, 16, 16>}, {transform_indices = @transform_2, window_bounds = array<i64: 1, 8, 128>}]} {
    %c0_i32 = arith.constant 0 : i32
    %0 = arith.cmpi eq, %arg1, %c0_i32 : i32
    %1 = arith.extui %0 : i1 to i32
    %c0_i32_0 = arith.constant 0 : i32
    %2 = arith.cmpi ne, %1, %c0_i32_0 : i32
    scf.if %2 {
      %cst_64 = arith.constant 0.000000e+00 : f32
      %97 = vector.broadcast %cst_64 : f32 to vector<16x16xf32>
      %c0_65 = arith.constant 0 : index
      %c0_66 = arith.constant 0 : index
      %98 = vector.load %arg5[%c0_65, %c0_66] : memref<16x16xf32, #tpu.memory_space<vmem>>, vector<16x16xf32>
      tpu.vector_store %arg5[%c0_65, %c0_66], %97 {strides = array<i32>} : memref<16x16xf32, #tpu.memory_space<vmem>>, vector<16x16xf32>,
      %cst_67 = arith.constant 0.000000e+00 : f32
      %99 = vector.broadcast %cst_67 : f32 to vector<2x16x16xf32>
      %c0_68 = arith.constant 0 : index
      %c0_69 = arith.constant 0 : index
      %c0_70 = arith.constant 0 : index
      %100 = vector.load %arg6[%c0_68, %c0_69, %c0_70] : memref<2x16x16xf32, #tpu.memory_space<vmem>>, vector<2x16x16xf32>
      tpu.vector_store %arg6[%c0_68, %c0_69, %c0_70], %99 {strides = array<i32>} : memref<2x16x16xf32, #tpu.memory_space<vmem>>, vector<2x16x16xf32>,
      %cst_71 = arith.constant 0.000000e+00 : f32
      %101 = vector.broadcast %cst_71 : f32 to vector<2x16x16xf32>
      %c0_72 = arith.constant 0 : index
      %c0_73 = arith.constant 0 : index
      %c0_74 = arith.constant 0 : index
      %102 = vector.load %arg7[%c0_72, %c0_73, %c0_74] : memref<2x16x16xf32, #tpu.memory_space<vmem>>, vector<2x16x16xf32>
      tpu.vector_store %arg7[%c0_72, %c0_73, %c0_74], %101 {strides = array<i32>} : memref<2x16x16xf32, #tpu.memory_space<vmem>>, vector<2x16x16xf32>,
      %cst_75 = arith.constant 0.000000e+00 : f32
      %103 = vector.broadcast %cst_75 : f32 to vector<2x16x16xf32>
      %c0_76 = arith.constant 0 : index
      %c0_77 = arith.constant 0 : index
      %c0_78 = arith.constant 0 : index
      %104 = vector.load %arg8[%c0_76, %c0_77, %c0_78] : memref<2x16x16xf32, #tpu.memory_space<vmem>>, vector<2x16x16xf32>
      tpu.vector_store %arg8[%c0_76, %c0_77, %c0_78], %103 {strides = array<i32>} : memref<2x16x16xf32, #tpu.memory_space<vmem>>, vector<2x16x16xf32>,
    } else {
    }
    %c0 = arith.constant 0 : index
    %c0_1 = arith.constant 0 : index
    %c0_2 = arith.constant 0 : index
    %c0_3 = arith.constant 0 : index
    %3 = vector.load %arg2[%c0, %c0_1, %c0_2, %c0_3] : memref<1x2x16x16xf32, #tpu.memory_space<vmem>>, vector<1x1x16x16xf32>
    %4 = vector.shape_cast %3 : vector<1x1x16x16xf32> to vector<16x16xf32>
    %c0_4 = arith.constant 0 : index
    %c1 = arith.constant 1 : index
    %c0_5 = arith.constant 0 : index
    %c0_6 = arith.constant 0 : index
    %5 = vector.load %arg2[%c0_4, %c1, %c0_5, %c0_6] : memref<1x2x16x16xf32, #tpu.memory_space<vmem>>, vector<1x1x16x16xf32>
    %6 = vector.shape_cast %5 : vector<1x1x16x16xf32> to vector<16x16xf32>
    %c0_7 = arith.constant 0 : index
    %c0_8 = arith.constant 0 : index
    %c0_9 = arith.constant 0 : index
    %c0_10 = arith.constant 0 : index
    %7 = vector.load %arg3[%c0_7, %c0_8, %c0_9, %c0_10] : memref<1x1x16x16xi32, #tpu.memory_space<vmem>>, vector<1x1x16x16xi32>
    %8 = vector.shape_cast %7 : vector<1x1x16x16xi32> to vector<16x16xi32>
    %9 = arith.maximumf %4, %6 : vector<16x16xf32>
    %10 = arith.subf %4, %9 : vector<16x16xf32>
    %11 = math.exp %10 : vector<16x16xf32>
    %12 = arith.subf %6, %9 : vector<16x16xf32>
    %13 = math.exp %12 : vector<16x16xf32>
    %14 = arith.addf %11, %13 : vector<16x16xf32>
    %15 = math.log %14 : vector<16x16xf32>
    %16 = arith.addf %9, %15 : vector<16x16xf32>
    %c0_i32_11 = arith.constant 0 : i32
    %17 = vector.broadcast %c0_i32_11 : i32 to vector<16x16xi32>
    %18 = arith.cmpi eq, %8, %17 : vector<16x16xi32>
    %cst = arith.constant 0.000000e+00 : f32
    %19 = vector.broadcast %cst : f32 to vector<16x16xf32>
    %20 = arith.select %18, %4, %19 : vector<16x16xi1>, vector<16x16xf32>
    %c1_i32 = arith.constant 1 : i32
    %21 = vector.broadcast %c1_i32 : i32 to vector<16x16xi32>
    %22 = arith.cmpi eq, %8, %21 : vector<16x16xi32>
    %cst_12 = arith.constant 0.000000e+00 : f32
    %23 = vector.broadcast %cst_12 : f32 to vector<16x16xf32>
    %24 = arith.select %22, %6, %23 : vector<16x16xi1>, vector<16x16xf32>
    %25 = arith.addf %20, %24 : vector<16x16xf32>
    %26 = arith.subf %16, %25 : vector<16x16xf32>
    %c0_13 = arith.constant 0 : index
    %c0_14 = arith.constant 0 : index
    %27 = vector.load %arg5[%c0_13, %c0_14] : memref<16x16xf32, #tpu.memory_space<vmem>>, vector<16x16xf32>
    %28 = arith.addf %27, %26 : vector<16x16xf32>
    %c0_15 = arith.constant 0 : index
    %c0_16 = arith.constant 0 : index
    %29 = vector.load %arg5[%c0_15, %c0_16] : memref<16x16xf32, #tpu.memory_space<vmem>>, vector<16x16xf32>
    tpu.vector_store %arg5[%c0_15, %c0_16], %28 {strides = array<i32>} : memref<16x16xf32, #tpu.memory_space<vmem>>, vector<16x16xf32>,
    %c0_i32_17 = arith.constant 0 : i32
    %30 = vector.broadcast %c0_i32_17 : i32 to vector<16x16xi32>
    %31 = arith.cmpf oeq, %6, %9 : vector<16x16xf32>
    %c1_i32_18 = arith.constant 1 : i32
    %32 = vector.broadcast %c1_i32_18 : i32 to vector<16x16xi32>
    %33 = arith.select %31, %32, %30 : vector<16x16xi1>, vector<16x16xi32>
    %34 = arith.cmpf oeq, %4, %9 : vector<16x16xf32>
    %c0_i32_19 = arith.constant 0 : i32
    %35 = vector.broadcast %c0_i32_19 : i32 to vector<16x16xi32>
    %36 = arith.select %34, %35, %33 : vector<16x16xi1>, vector<16x16xi32>
    %37 = arith.cmpi eq, %36, %8 : vector<16x16xi32>
    %c0_i32_20 = arith.constant 0 : i32
    %38 = vector.broadcast %c0_i32_20 : i32 to vector<16x16xi32>
    %39 = arith.cmpi eq, %8, %38 : vector<16x16xi32>
    %40 = arith.extui %39 : vector<16x16xi1> to vector<16x16xi32>
    %41 = arith.sitofp %40 : vector<16x16xi32> to vector<16x16xf32>
    %c0_i32_21 = arith.constant 0 : i32
    %42 = vector.broadcast %c0_i32_21 : i32 to vector<16x16xi32>
    %43 = arith.cmpi eq, %36, %42 : vector<16x16xi32>
    %44 = arith.extui %43 : vector<16x16xi1> to vector<16x16xi32>
    %45 = arith.sitofp %44 : vector<16x16xi32> to vector<16x16xf32>
    %c0_22 = arith.constant 0 : index
    %c0_23 = arith.constant 0 : index
    %c0_24 = arith.constant 0 : index
    %46 = vector.load %arg6[%c0_22, %c0_23, %c0_24] : memref<2x16x16xf32, #tpu.memory_space<vmem>>, vector<1x16x16xf32>
    %47 = vector.shape_cast %46 : vector<1x16x16xf32> to vector<16x16xf32>
    %cst_25 = arith.constant 0.000000e+00 : f32
    %48 = vector.broadcast %cst_25 : f32 to vector<16x16xf32>
    %49 = arith.select %37, %41, %48 : vector<16x16xi1>, vector<16x16xf32>
    %50 = arith.addf %47, %49 : vector<16x16xf32>
    %c0_26 = arith.constant 0 : index
    %c0_27 = arith.constant 0 : index
    %c0_28 = arith.constant 0 : index
    %51 = vector.load %arg6[%c0_26, %c0_27, %c0_28] : memref<2x16x16xf32, #tpu.memory_space<vmem>>, vector<1x16x16xf32>
    %52 = vector.shape_cast %51 : vector<1x16x16xf32> to vector<16x16xf32>
    %53 = vector.shape_cast %50 : vector<16x16xf32> to vector<1x16x16xf32>
    tpu.vector_store %arg6[%c0_26, %c0_27, %c0_28], %53 {strides = array<i32>} : memref<2x16x16xf32, #tpu.memory_space<vmem>>, vector<1x16x16xf32>,
    %c0_29 = arith.constant 0 : index
    %c0_30 = arith.constant 0 : index
    %c0_31 = arith.constant 0 : index
    %54 = vector.load %arg7[%c0_29, %c0_30, %c0_31] : memref<2x16x16xf32, #tpu.memory_space<vmem>>, vector<1x16x16xf32>
    %55 = vector.shape_cast %54 : vector<1x16x16xf32> to vector<16x16xf32>
    %56 = arith.addf %55, %45 : vector<16x16xf32>
    %c0_32 = arith.constant 0 : index
    %c0_33 = arith.constant 0 : index
    %c0_34 = arith.constant 0 : index
    %57 = vector.load %arg7[%c0_32, %c0_33, %c0_34] : memref<2x16x16xf32, #tpu.memory_space<vmem>>, vector<1x16x16xf32>
    %58 = vector.shape_cast %57 : vector<1x16x16xf32> to vector<16x16xf32>
    %59 = vector.shape_cast %56 : vector<16x16xf32> to vector<1x16x16xf32>
    tpu.vector_store %arg7[%c0_32, %c0_33, %c0_34], %59 {strides = array<i32>} : memref<2x16x16xf32, #tpu.memory_space<vmem>>, vector<1x16x16xf32>,
    %c0_35 = arith.constant 0 : index
    %c0_36 = arith.constant 0 : index
    %c0_37 = arith.constant 0 : index
    %60 = vector.load %arg8[%c0_35, %c0_36, %c0_37] : memref<2x16x16xf32, #tpu.memory_space<vmem>>, vector<1x16x16xf32>
    %61 = vector.shape_cast %60 : vector<1x16x16xf32> to vector<16x16xf32>
    %62 = arith.addf %61, %41 : vector<16x16xf32>
    %c0_38 = arith.constant 0 : index
    %c0_39 = arith.constant 0 : index
    %c0_40 = arith.constant 0 : index
    %63 = vector.load %arg8[%c0_38, %c0_39, %c0_40] : memref<2x16x16xf32, #tpu.memory_space<vmem>>, vector<1x16x16xf32>
    %64 = vector.shape_cast %63 : vector<1x16x16xf32> to vector<16x16xf32>
    %65 = vector.shape_cast %62 : vector<16x16xf32> to vector<1x16x16xf32>
    tpu.vector_store %arg8[%c0_38, %c0_39, %c0_40], %65 {strides = array<i32>} : memref<2x16x16xf32, #tpu.memory_space<vmem>>, vector<1x16x16xf32>,
    %c1_i32_41 = arith.constant 1 : i32
    %66 = vector.broadcast %c1_i32_41 : i32 to vector<16x16xi32>
    %67 = arith.cmpi eq, %8, %66 : vector<16x16xi32>
    %68 = arith.extui %67 : vector<16x16xi1> to vector<16x16xi32>
    %69 = arith.sitofp %68 : vector<16x16xi32> to vector<16x16xf32>
    %c1_i32_42 = arith.constant 1 : i32
    %70 = vector.broadcast %c1_i32_42 : i32 to vector<16x16xi32>
    %71 = arith.cmpi eq, %36, %70 : vector<16x16xi32>
    %72 = arith.extui %71 : vector<16x16xi1> to vector<16x16xi32>
    %73 = arith.sitofp %72 : vector<16x16xi32> to vector<16x16xf32>
    %c1_43 = arith.constant 1 : index
    %c0_44 = arith.constant 0 : index
    %c0_45 = arith.constant 0 : index
    %74 = vector.load %arg6[%c1_43, %c0_44, %c0_45] : memref<2x16x16xf32, #tpu.memory_space<vmem>>, vector<1x16x16xf32>
    %75 = vector.shape_cast %74 : vector<1x16x16xf32> to vector<16x16xf32>
    %cst_46 = arith.constant 0.000000e+00 : f32
    %76 = vector.broadcast %cst_46 : f32 to vector<16x16xf32>
    %77 = arith.select %37, %69, %76 : vector<16x16xi1>, vector<16x16xf32>
    %78 = arith.addf %75, %77 : vector<16x16xf32>
    %c1_47 = arith.constant 1 : index
    %c0_48 = arith.constant 0 : index
    %c0_49 = arith.constant 0 : index
    %79 = vector.load %arg6[%c1_47, %c0_48, %c0_49] : memref<2x16x16xf32, #tpu.memory_space<vmem>>, vector<1x16x16xf32>
    %80 = vector.shape_cast %79 : vector<1x16x16xf32> to vector<16x16xf32>
    %81 = vector.shape_cast %78 : vector<16x16xf32> to vector<1x16x16xf32>
    tpu.vector_store %arg6[%c1_47, %c0_48, %c0_49], %81 {strides = array<i32>} : memref<2x16x16xf32, #tpu.memory_space<vmem>>, vector<1x16x16xf32>,
    %c1_50 = arith.constant 1 : index
    %c0_51 = arith.constant 0 : index
    %c0_52 = arith.constant 0 : index
    %82 = vector.load %arg7[%c1_50, %c0_51, %c0_52] : memref<2x16x16xf32, #tpu.memory_space<vmem>>, vector<1x16x16xf32>
    %83 = vector.shape_cast %82 : vector<1x16x16xf32> to vector<16x16xf32>
    %84 = arith.addf %83, %73 : vector<16x16xf32>
    %c1_53 = arith.constant 1 : index
    %c0_54 = arith.constant 0 : index
    %c0_55 = arith.constant 0 : index
    %85 = vector.load %arg7[%c1_53, %c0_54, %c0_55] : memref<2x16x16xf32, #tpu.memory_space<vmem>>, vector<1x16x16xf32>
    %86 = vector.shape_cast %85 : vector<1x16x16xf32> to vector<16x16xf32>
    %87 = vector.shape_cast %84 : vector<16x16xf32> to vector<1x16x16xf32>
    tpu.vector_store %arg7[%c1_53, %c0_54, %c0_55], %87 {strides = array<i32>} : memref<2x16x16xf32, #tpu.memory_space<vmem>>, vector<1x16x16xf32>,
    %c1_56 = arith.constant 1 : index
    %c0_57 = arith.constant 0 : index
    %c0_58 = arith.constant 0 : index
    %88 = vector.load %arg8[%c1_56, %c0_57, %c0_58] : memref<2x16x16xf32, #tpu.memory_space<vmem>>, vector<1x16x16xf32>
    %89 = vector.shape_cast %88 : vector<1x16x16xf32> to vector<16x16xf32>
    %90 = arith.addf %89, %69 : vector<16x16xf32>
    %c1_59 = arith.constant 1 : index
    %c0_60 = arith.constant 0 : index
    %c0_61 = arith.constant 0 : index
    %91 = vector.load %arg8[%c1_59, %c0_60, %c0_61] : memref<2x16x16xf32, #tpu.memory_space<vmem>>, vector<1x16x16xf32>
    %92 = vector.shape_cast %91 : vector<1x16x16xf32> to vector<16x16xf32>
    %93 = vector.shape_cast %90 : vector<16x16xf32> to vector<1x16x16xf32>
    tpu.vector_store %arg8[%c1_59, %c0_60, %c0_61], %93 {strides = array<i32>} : memref<2x16x16xf32, #tpu.memory_space<vmem>>, vector<1x16x16xf32>,
    %c0_i32_62 = arith.constant 0 : i32
    %94 = arith.cmpi eq, %arg1, %c0_i32_62 : i32
    %95 = arith.extui %94 : i1 to i32
    %c0_i32_63 = arith.constant 0 : i32
    %96 = arith.cmpi ne, %95, %c0_i32_63 : i32
    scf.if %96 {
      %c0_64 = arith.constant 0 : index
      %c0_65 = arith.constant 0 : index
      %97 = vector.load %arg5[%c0_64, %c0_65] : memref<16x16xf32, #tpu.memory_space<vmem>>, vector<16x16xf32>
      %98 = vector.shape_cast %97 : vector<16x16xf32> to vector<1x16x16xf32>
      %cst_66 = arith.constant dense<0.000000e+00> : vector<1xf32>
      %99 = vector.multi_reduction <add>, %98, %cst_66 [1, 2] : vector<1x16x16xf32> to vector<1xf32>
      %100 = vector.shape_cast %99 : vector<1xf32> to vector<1x1x1xf32>
      %101 = vector.extract %100[0, 0, 0] : f32 from vector<1x1x1xf32>
      %c0_67 = arith.constant 0 : index
      %c0_68 = arith.constant 0 : index
      %c0_69 = arith.constant 0 : index
      %102 = vector.load %arg6[%c0_67, %c0_68, %c0_69] : memref<2x16x16xf32, #tpu.memory_space<vmem>>, vector<1x16x16xf32>
      %103 = vector.shape_cast %102 : vector<1x16x16xf32> to vector<16x16xf32>
      %104 = vector.shape_cast %103 : vector<16x16xf32> to vector<1x16x16xf32>
      %cst_70 = arith.constant dense<0.000000e+00> : vector<1xf32>
      %105 = vector.multi_reduction <add>, %104, %cst_70 [1, 2] : vector<1x16x16xf32> to vector<1xf32>
      %106 = vector.shape_cast %105 : vector<1xf32> to vector<1x1x1xf32>
      %107 = vector.extract %106[0, 0, 0] : f32 from vector<1x1x1xf32>
      %c1_71 = arith.constant 1 : index
      %c0_72 = arith.constant 0 : index
      %c0_73 = arith.constant 0 : index
      %108 = vector.load %arg6[%c1_71, %c0_72, %c0_73] : memref<2x16x16xf32, #tpu.memory_space<vmem>>, vector<1x16x16xf32>
      %109 = vector.shape_cast %108 : vector<1x16x16xf32> to vector<16x16xf32>
      %110 = vector.shape_cast %109 : vector<16x16xf32> to vector<1x16x16xf32>
      %cst_74 = arith.constant dense<0.000000e+00> : vector<1xf32>
      %111 = vector.multi_reduction <add>, %110, %cst_74 [1, 2] : vector<1x16x16xf32> to vector<1xf32>
      %112 = vector.shape_cast %111 : vector<1xf32> to vector<1x1x1xf32>
      %113 = vector.extract %112[0, 0, 0] : f32 from vector<1x1x1xf32>
      %c0_75 = arith.constant 0 : index
      %c0_76 = arith.constant 0 : index
      %c0_77 = arith.constant 0 : index
      %114 = vector.load %arg7[%c0_75, %c0_76, %c0_77] : memref<2x16x16xf32, #tpu.memory_space<vmem>>, vector<1x16x16xf32>
      %115 = vector.shape_cast %114 : vector<1x16x16xf32> to vector<16x16xf32>
      %116 = vector.shape_cast %115 : vector<16x16xf32> to vector<1x16x16xf32>
      %cst_78 = arith.constant dense<0.000000e+00> : vector<1xf32>
      %117 = vector.multi_reduction <add>, %116, %cst_78 [1, 2] : vector<1x16x16xf32> to vector<1xf32>
      %118 = vector.shape_cast %117 : vector<1xf32> to vector<1x1x1xf32>
      %119 = vector.extract %118[0, 0, 0] : f32 from vector<1x1x1xf32>
      %c1_79 = arith.constant 1 : index
      %c0_80 = arith.constant 0 : index
      %c0_81 = arith.constant 0 : index
      %120 = vector.load %arg7[%c1_79, %c0_80, %c0_81] : memref<2x16x16xf32, #tpu.memory_space<vmem>>, vector<1x16x16xf32>
      %121 = vector.shape_cast %120 : vector<1x16x16xf32> to vector<16x16xf32>
      %122 = vector.shape_cast %121 : vector<16x16xf32> to vector<1x16x16xf32>
      %cst_82 = arith.constant dense<0.000000e+00> : vector<1xf32>
      %123 = vector.multi_reduction <add>, %122, %cst_82 [1, 2] : vector<1x16x16xf32> to vector<1xf32>
      %124 = vector.shape_cast %123 : vector<1xf32> to vector<1x1x1xf32>
      %125 = vector.extract %124[0, 0, 0] : f32 from vector<1x1x1xf32>
      %c0_83 = arith.constant 0 : index
      %c0_84 = arith.constant 0 : index
      %c0_85 = arith.constant 0 : index
      %126 = vector.load %arg8[%c0_83, %c0_84, %c0_85] : memref<2x16x16xf32, #tpu.memory_space<vmem>>, vector<1x16x16xf32>
      %127 = vector.shape_cast %126 : vector<1x16x16xf32> to vector<16x16xf32>
      %128 = vector.shape_cast %127 : vector<16x16xf32> to vector<1x16x16xf32>
      %cst_86 = arith.constant dense<0.000000e+00> : vector<1xf32>
      %129 = vector.multi_reduction <add>, %128, %cst_86 [1, 2] : vector<1x16x16xf32> to vector<1xf32>
      %130 = vector.shape_cast %129 : vector<1xf32> to vector<1x1x1xf32>
      %131 = vector.extract %130[0, 0, 0] : f32 from vector<1x1x1xf32>
      %c1_87 = arith.constant 1 : index
      %c0_88 = arith.constant 0 : index
      %c0_89 = arith.constant 0 : index
      %132 = vector.load %arg8[%c1_87, %c0_88, %c0_89] : memref<2x16x16xf32, #tpu.memory_space<vmem>>, vector<1x16x16xf32>
      %133 = vector.shape_cast %132 : vector<1x16x16xf32> to vector<16x16xf32>
      %134 = vector.shape_cast %133 : vector<16x16xf32> to vector<1x16x16xf32>
      %cst_90 = arith.constant dense<0.000000e+00> : vector<1xf32>
      %135 = vector.multi_reduction <add>, %134, %cst_90 [1, 2] : vector<1x16x16xf32> to vector<1xf32>
      %136 = vector.shape_cast %135 : vector<1xf32> to vector<1x1x1xf32>
      %137 = vector.extract %136[0, 0, 0] : f32 from vector<1x1x1xf32>
      %138 = tpu.iota {dimensions = array<i32: 1>} : vector<8x128xi32>
      %139 = tpu.iota {dimensions = array<i32: 0>} : vector<8x128xi32>
      %cst_91 = arith.constant 0.000000e+00 : f32
      %140 = vector.broadcast %cst_91 : f32 to vector<8x128xf32>
      %c0_i32_92 = arith.constant 0 : i32
      %141 = vector.broadcast %c0_i32_92 : i32 to vector<8x128xi32>
      %142 = arith.cmpi eq, %139, %141 : vector<8x128xi32>
      %c0_i32_93 = arith.constant 0 : i32
      %143 = vector.broadcast %c0_i32_93 : i32 to vector<8x128xi32>
      %144 = arith.cmpi eq, %138, %143 : vector<8x128xi32>
      %145 = arith.andi %142, %144 : vector<8x128xi1>
      %146 = vector.broadcast %101 : f32 to vector<8x128xf32>
      %147 = arith.select %145, %146, %140 : vector<8x128xi1>, vector<8x128xf32>
      %c0_i32_94 = arith.constant 0 : i32
      %148 = vector.broadcast %c0_i32_94 : i32 to vector<8x128xi32>
      %149 = arith.cmpi eq, %139, %148 : vector<8x128xi32>
      %c1_i32_95 = arith.constant 1 : i32
      %150 = vector.broadcast %c1_i32_95 : i32 to vector<8x128xi32>
      %151 = arith.cmpi eq, %138, %150 : vector<8x128xi32>
      %152 = arith.andi %149, %151 : vector<8x128xi1>
      %153 = vector.broadcast %107 : f32 to vector<8x128xf32>
      %154 = arith.select %152, %153, %147 : vector<8x128xi1>, vector<8x128xf32>
      %c0_i32_96 = arith.constant 0 : i32
      %155 = vector.broadcast %c0_i32_96 : i32 to vector<8x128xi32>
      %156 = arith.cmpi eq, %139, %155 : vector<8x128xi32>
      %c2_i32 = arith.constant 2 : i32
      %157 = vector.broadcast %c2_i32 : i32 to vector<8x128xi32>
      %158 = arith.cmpi eq, %138, %157 : vector<8x128xi32>
      %159 = arith.andi %156, %158 : vector<8x128xi1>
      %160 = vector.broadcast %113 : f32 to vector<8x128xf32>
      %161 = arith.select %159, %160, %154 : vector<8x128xi1>, vector<8x128xf32>
      %c0_i32_97 = arith.constant 0 : i32
      %162 = vector.broadcast %c0_i32_97 : i32 to vector<8x128xi32>
      %163 = arith.cmpi eq, %139, %162 : vector<8x128xi32>
      %c3_i32 = arith.constant 3 : i32
      %164 = vector.broadcast %c3_i32 : i32 to vector<8x128xi32>
      %165 = arith.cmpi eq, %138, %164 : vector<8x128xi32>
      %166 = arith.andi %163, %165 : vector<8x128xi1>
      %167 = vector.broadcast %119 : f32 to vector<8x128xf32>
      %168 = arith.select %166, %167, %161 : vector<8x128xi1>, vector<8x128xf32>
      %c0_i32_98 = arith.constant 0 : i32
      %169 = vector.broadcast %c0_i32_98 : i32 to vector<8x128xi32>
      %170 = arith.cmpi eq, %139, %169 : vector<8x128xi32>
      %c4_i32 = arith.constant 4 : i32
      %171 = vector.broadcast %c4_i32 : i32 to vector<8x128xi32>
      %172 = arith.cmpi eq, %138, %171 : vector<8x128xi32>
      %173 = arith.andi %170, %172 : vector<8x128xi1>
      %174 = vector.broadcast %125 : f32 to vector<8x128xf32>
      %175 = arith.select %173, %174, %168 : vector<8x128xi1>, vector<8x128xf32>
      %c0_i32_99 = arith.constant 0 : i32
      %176 = vector.broadcast %c0_i32_99 : i32 to vector<8x128xi32>
      %177 = arith.cmpi eq, %139, %176 : vector<8x128xi32>
      %c5_i32 = arith.constant 5 : i32
      %178 = vector.broadcast %c5_i32 : i32 to vector<8x128xi32>
      %179 = arith.cmpi eq, %138, %178 : vector<8x128xi32>
      %180 = arith.andi %177, %179 : vector<8x128xi1>
      %181 = vector.broadcast %131 : f32 to vector<8x128xf32>
      %182 = arith.select %180, %181, %175 : vector<8x128xi1>, vector<8x128xf32>
      %c0_i32_100 = arith.constant 0 : i32
      %183 = vector.broadcast %c0_i32_100 : i32 to vector<8x128xi32>
      %184 = arith.cmpi eq, %139, %183 : vector<8x128xi32>
      %c6_i32 = arith.constant 6 : i32
      %185 = vector.broadcast %c6_i32 : i32 to vector<8x128xi32>
      %186 = arith.cmpi eq, %138, %185 : vector<8x128xi32>
      %187 = arith.andi %184, %186 : vector<8x128xi1>
      %188 = vector.broadcast %137 : f32 to vector<8x128xf32>
      %189 = arith.select %187, %188, %182 : vector<8x128xi1>, vector<8x128xf32>
      %c0_101 = arith.constant 0 : index
      %c0_102 = arith.constant 0 : index
      %c0_103 = arith.constant 0 : index
      %190 = vector.load %arg4[%c0_101, %c0_102, %c0_103] : memref<1x8x128xf32, #tpu.memory_space<vmem>>, vector<1x8x128xf32>
      %191 = vector.shape_cast %190 : vector<1x8x128xf32> to vector<8x128xf32>
      %192 = vector.shape_cast %189 : vector<8x128xf32> to vector<1x8x128xf32>
      tpu.vector_store %arg4[%c0_101, %c0_102, %c0_103], %192 {strides = array<i32>} : memref<1x8x128xf32, #tpu.memory_space<vmem>>, vector<1x8x128xf32>,
    } else {
    }
    return
  }
  func.func @transform_0(%arg0: i32, %arg1: i32) -> (i32, i32, i32, i32) {
    %c0_i32 = arith.constant 0 : i32
    %c0_i32_0 = arith.constant 0 : i32
    %c0_i32_1 = arith.constant 0 : i32
    return %arg0, %c0_i32, %arg1, %c0_i32_0 : i32, i32, i32, i32
  }
  func.func @transform_1(%arg0: i32, %arg1: i32) -> (i32, i32, i32, i32) {
    %c0_i32 = arith.constant 0 : i32
    %c0_i32_0 = arith.constant 0 : i32
    %c0_i32_1 = arith.constant 0 : i32
    return %arg0, %c0_i32, %arg1, %c0_i32_0 : i32, i32, i32, i32
  }
  func.func @transform_2(%arg0: i32, %arg1: i32) -> (i32, i32, i32) {
    %c0_i32 = arith.constant 0 : i32
    %c0_i32_0 = arith.constant 0 : i32
    %c0_i32_1 = arith.constant 0 : i32
    return %arg0, %c0_i32, %c0_i32_0 : i32, i32, i32
  }
}

</mosaic_0001>

<llo_original>
// kernel: criterion_loss.1
$region0: #{criterion_loss.1}
  #allocation0 [shape = 'u32[]', space=smem, size = 0x4, offset = 0x4, fixed_abs, tag = 'smem constant byte address 0x4 - core index']
  #allocation1 [shape = 'u32[144,128]{1,0:T(1,128)}', space=vmem, size = 0x12000, scoped, tag = 'internal scratch']
  #allocation2 [shape = 'f32[16,16]{1,0:T(8,128)}', space=vmem, size = 0x2000, scoped, tag = 'scratch operand']
  #allocation3 [shape = 'f32[2,16,16]{2,1,0:T(8,128)}', space=vmem, size = 0x4000, scoped, tag = 'scratch operand']
  #allocation4 [shape = 'f32[2,16,16]{2,1,0:T(8,128)}', space=vmem, size = 0x4000, scoped, tag = 'scratch operand']
  #allocation5 [shape = 'f32[2,16,16]{2,1,0:T(8,128)}', space=vmem, size = 0x4000, scoped, tag = 'scratch operand']
  %s0 = inlined_call_operand.hbm [shape: f32[2,2,16,16], index: 0, kind: input, shape index: {}]
  %s1 = inlined_call_operand.hbm [shape: s32[2,1,16,16], index: 1, kind: input, shape index: {}]
  %s2 = inlined_call_operand.vmem [shape: f32[2,8,128], index: 2, kind: output, shape index: {}]
  %s3 = sld [smem:[#allocation0]]
  $region57: #{criterion_loss.1} parent=0
    _
  %s5 = ssub.s32 1, %s3
  %s6 = scalar_select 0, %s5, %s3
  $region1: #{criterion_loss.1} parent=0
    #allocation6 [shape = 'u8[32768]{0}', space=vmem, size = 0x8000, scoped, tag = 'input window, operand 0']
    #allocation7 [shape = 's32[2]{0}', space=sflag, size = 0x8, scoped, tag = 'scoped memory for criterion_loss.1']
    #allocation8 [shape = 'u8[16384]{0}', space=vmem, size = 0x4000, scoped, tag = 'input window, operand 1']
    #allocation9 [shape = 's32[2]{0}', space=sflag, size = 0x8, scoped, tag = 'scoped memory for criterion_loss.1']
    %7 = vsyncpa [#allocation7], 0
    %s8 = scalar_lea.sflag [#allocation7], 1
    %9 = vsyncpa %s8, 0
    %10 = vsyncpa [#allocation9], 0
    %s11 = scalar_lea.sflag [#allocation9], 1
    %12 = vsyncpa %s11, 0
    loop: start=0, step=1, limit=4
    $region2: #{criterion_loss.1} parent=1 // loop_pre_header
      _
    $region3: #{criterion_loss.1} parent=1 // loop_header
      %s14 = sphi 0, %s18
      %p15 = scmp.ge.s32.totalorder %s14, 4
      %s21 = sphi 0, %s33
      %s22 = sphi 0, %s29
      %s23 = sphi 0, %s21
      %s24 = sphi 0, %s22
      %s25 = sphi 0, %s23
      %s26 = sphi 0, %s24
      %s38 = sphi 0, %s40
      %s41 = sphi 0, %s38
      %s42 = sphi 0, %s41
      %s58 = sphi 0, %s42
      %s66 = sphi 0, %s68
      %s69 = sphi 0, %s66
      %s70 = sphi 0, %s69
      %s86 = sphi 0, %s70
      %s92 = sphi 0, %s94
      %s95 = sphi 0, %s92
      %s96 = sphi 0, %s95
      %s112 = sphi 0, %s96
    $region4: #{criterion_loss.1} parent=1 // loop_header_branch
      %17 = sbr.rel (%p15) target = $region8
    $region5: #{criterion_loss.1} parent=1 // loop_body
      %s19 = ssub.s32 %s14, 1
      %s20 = ssub.s32 %s14, 2
      %s27 = sadd.s32 1, %s22
      %p28 = scmp.ge.s32.totalorder %s27, 1
      %s29 = scalar_select %p28, 0, %s27
      %s30 = sadd.s32 1, %s21
      %s31 = scalar_select %p28, %s30, %s21
      %p32 = scmp.ge.s32.totalorder %s31, 2
      %s33 = scalar_select %p32, 0, %s31
      %s34 = ssub.s32 %s21, %s33
      %s35 = ssub.s32 %s22, %s29
      %s36 = sor.u32 %s34, %s35
      %p37 = scmp.eq.s32.totalorder %s36, 0
      %s39 = sadd.s32 %s38, 1
      %s40 = scalar_select %p37, %s38, %s39
      %p43 = pneg %p37
      %p44 = scmp.eq.s32.totalorder %s14, 1
      %p45 = por %p43, %p44
      %p46 = scmp.ne.s32.totalorder %s38, %s41
      %p47 = scmp.eq.s32.totalorder %s14, 0
      %p48 = por %p46, %p47
      %p49 = scmp.ne.s32.totalorder %s38, %s41
      %p50 = scmp.eq.s32.totalorder %s19, 1
      %p51 = por %p49, %p50
      %p52 = scmp.ne.s32.totalorder %s41, %s42
      %p53 = scmp.eq.s32.totalorder %s19, 0
      %p54 = por %p52, %p53
      %p55 = scmp.ne.s32.totalorder %s41, %s42
      %p56 = scmp.eq.s32.totalorder %s20, 1
      %p57 = por %p55, %p56
      %p59 = scmp.ne.s32.totalorder %s42, %s58
      %p60 = scmp.eq.s32.totalorder %s20, 0
      %p61 = por %p59, %p60
      %s62 = ssub.s32 %s21, %s33
      %s63 = ssub.s32 %s22, %s29
      %s64 = sor.u32 %s62, %s63
      %p65 = scmp.eq.s32.totalorder %s64, 0
      %s67 = sadd.s32 %s66, 1
      %s68 = scalar_select %p65, %s66, %s67
      %p71 = pneg %p65
      %p72 = scmp.eq.s32.totalorder %s14, 1
      %p73 = por %p71, %p72
      %p74 = scmp.ne.s32.totalorder %s66, %s69
      %p75 = scmp.eq.s32.totalorder %s14, 0
      %p76 = por %p74, %p75
      %p77 = scmp.ne.s32.totalorder %s66, %s69
      %p78 = scmp.eq.s32.totalorder %s19, 1
      %p79 = por %p77, %p78
      %p80 = scmp.ne.s32.totalorder %s69, %s70
      %p81 = scmp.eq.s32.totalorder %s19, 0
      %p82 = por %p80, %p81
      %p83 = scmp.ne.s32.totalorder %s69, %s70
      %p84 = scmp.eq.s32.totalorder %s20, 1
      %p85 = por %p83, %p84
      %p87 = scmp.ne.s32.totalorder %s70, %s86
      %p88 = scmp.eq.s32.totalorder %s20, 0
      %p89 = por %p87, %p88
      %s90 = ssub.s32 %s21, %s33
      %p91 = scmp.eq.s32.totalorder %s90, 0
      %s93 = sadd.s32 %s92, 1
      %s94 = scalar_select %p91, %s92, %s93
      %p97 = pneg %p91
      %p98 = scmp.eq.s32.totalorder %s14, 1
      %p99 = por %p97, %p98
      %p100 = scmp.ne.s32.totalorder %s92, %s95
      %p101 = scmp.eq.s32.totalorder %s14, 0
      %p102 = por %p100, %p101
      %p103 = scmp.ne.s32.totalorder %s92, %s95
      %p104 = scmp.eq.s32.totalorder %s19, 1
      %p105 = por %p103, %p104
      %p106 = scmp.ne.s32.totalorder %s95, %s96
      %p107 = scmp.eq.s32.totalorder %s19, 0
      %p108 = por %p106, %p107
      %p109 = scmp.ne.s32.totalorder %s95, %s96
      %p110 = scmp.eq.s32.totalorder %s20, 1
      %p111 = por %p109, %p110
      %p113 = scmp.ne.s32.totalorder %s96, %s112
      %p114 = scmp.eq.s32.totalorder %s20, 0
      %p115 = por %p113, %p114
      %p116 = scmp.le.s32.totalorder 1, %s14
      %p117 = scmp.lt.s32.totalorder %s14, 3
      %p118 = pnand %p116, %p117
      %p119 = pneg %p118
      // Predicated region
      $region9: #{criterion_loss.1} parent=5 // pred_check
        _
      $region10: #{criterion_loss.1} parent=5 // pred_check_branch
        %121 = sbr.rel (%p118) target = $region12
      $region11: #{criterion_loss.1} parent=5 // pred_region
        %s122 = ssub.s32 %s14, 1
      $region12: #{criterion_loss.1} parent=5 // pred_fallthru
        _
      %p123 = scmp.lt.s32.totalorder %s14, 2
      // Predicated region
      $region13: #{criterion_loss.1} parent=5 // pred_check
        %p124 = pneg %p123
      $region14: #{criterion_loss.1} parent=5 // pred_check_branch
        %126 = sbr.rel (%p124) target = $region16
      $region15: #{criterion_loss.1} parent=5 // pred_region
        // Predicated region
        $region17: #{criterion_loss.1} parent=15 // pred_check
          %p127 = pneg %p48
        $region18: #{criterion_loss.1} parent=15 // pred_check_branch
          %129 = sbr.rel (%p127) target = $region20
        $region19: #{criterion_loss.1} parent=15 // pred_region
          %s130 = sand.u32 %s38, 1
          %s131 = scalar_lea.sflag [#allocation7], %s130
          %s132 = sand.u32 %s38, 1
          %s133 = smul.addr %s132, 32
          %s134 = scalar_lea.vmem [#allocation6], %s133
          %s135 = smul.u32 2, %s22
          %s137 = ssub.s32 512, 512
          %138 = vsyncadd %s131, %s137
          %s139 = smul.addr %s21, 4
          %s140 = sadd.s32 %s135, %s139
          %s141 = smul.addr %s140, 128
          %s142 = scalar_lea.hbm %s0, %s141
          %s143 = sshll.u32 %s134, 4
          %s144 = int_to_ptr.vmem [resolvable:$true] %s143
          %149 = dma.hbm_to_vmem [thread:$0]  %s142, 512, %s144, %s131, 128, 128, 8
        $region20: #{criterion_loss.1} parent=15 // pred_fallthru
          _
        // Predicated region
        $region21: #{criterion_loss.1} parent=15 // pred_check
          %p150 = pneg %p76
        $region22: #{criterion_loss.1} parent=15 // pred_check_branch
          %152 = sbr.rel (%p150) target = $region24
        $region23: #{criterion_loss.1} parent=15 // pred_region
          %s153 = sand.u32 %s66, 1
          %s154 = scalar_lea.sflag [#allocation9], %s153
          %s155 = sand.u32 %s66, 1
          %s156 = smul.addr %s155, 16
          %s157 = scalar_lea.vmem [#allocation8], %s156
          %s158 = smul.u32 2, %s22
          %s160 = ssub.s32 256, 256
          %161 = vsyncadd %s154, %s160
          %s162 = smul.addr %s21, 2
          %s163 = sadd.s32 %s158, %s162
          %s164 = smul.addr %s163, 128
          %s165 = scalar_lea.hbm %s1, %s164
          %s166 = sshll.u32 %s157, 4
          %s167 = int_to_ptr.vmem [resolvable:$true] %s166
          %172 = dma.hbm_to_vmem [thread:$0]  %s165, 256, %s167, %s154, 128, 128, 8
        $region24: #{criterion_loss.1} parent=15 // pred_fallthru
          _
      $region16: #{criterion_loss.1} parent=5 // pred_fallthru
        _
      %p173 = scmp.le.s32.totalorder 1, %s14
      %p174 = scmp.lt.s32.totalorder %s14, 3
      %p175 = pnand %p173, %p174
      %p176 = pneg %p175
      // Predicated region
      $region25: #{criterion_loss.1} parent=5 // pred_check
        _
      $region26: #{criterion_loss.1} parent=5 // pred_check_branch
        %178 = sbr.rel (%p175) target = $region28
      $region27: #{criterion_loss.1} parent=5 // pred_region
        %s179 = ssub.s32 %s14, 1
        %s180 = sand.u32 %s41, 1
        %s181 = scalar_lea.sflag [#allocation7], %s180
        %s182 = sand.u32 %s41, 1
        %s183 = smul.addr %s182, 32
        %s184 = scalar_lea.vmem [#allocation6], %s183
        // Predicated region
        $region29: #{criterion_loss.1} parent=27 // pred_check
          %p185 = pneg %p54
        $region30: #{criterion_loss.1} parent=27 // pred_check_branch
          %187 = sbr.rel (%p185) target = $region32
        $region31: #{criterion_loss.1} parent=27 // pred_region
          %188 = dma.done %s181, 512
        $region32: #{criterion_loss.1} parent=27 // pred_fallthru
          _
        %s189 = sand.u32 %s69, 1
        %s190 = scalar_lea.sflag [#allocation9], %s189
        %s191 = sand.u32 %s69, 1
        %s192 = smul.addr %s191, 16
        %s193 = scalar_lea.vmem [#allocation8], %s192
        // Predicated region
        $region33: #{criterion_loss.1} parent=27 // pred_check
          %p194 = pneg %p82
        $region34: #{criterion_loss.1} parent=27 // pred_check_branch
          %196 = sbr.rel (%p194) target = $region36
        $region35: #{criterion_loss.1} parent=27 // pred_region
          %197 = dma.done %s190, 256
        $region36: #{criterion_loss.1} parent=27 // pred_fallthru
          _
        %s198 = sand.u32 %s41, 1
        %s199 = scalar_lea.sflag [#allocation7], %s198
        %s200 = sand.u32 %s41, 1
        %s201 = smul.addr %s200, 32
        %s202 = scalar_lea.vmem [#allocation6], %s201
        %p203 = pneg %p54
        %p204 = pneg %p51
        %s205 = sand.u32 %s69, 1
        %s206 = scalar_lea.sflag [#allocation9], %s205
        %s207 = sand.u32 %s69, 1
        %s208 = smul.addr %s207, 16
        %s209 = scalar_lea.vmem [#allocation8], %s208
        %p210 = pneg %p82
        %p211 = pneg %p79
        %p212 = pneg %p108
        %p213 = pneg %p105
        %p214 = scmp.lt.s32.totalorder %s23, 1
        %s215 = scalar_select %p214, %s23, 1
        %s216 = smul.addr %s215, 8
        %s217 = scalar_lea.vmem %s2, %s216
        %s218 = smul.u32 2, %s24
        %s219 = smul.u32 2, %s24
        %p220 = scmp.lt.s32.totalorder %s23, 1
        %s221 = scalar_select %p220, %s23, 1
        %s222 = smul.addr %s221, 8
        %s223 = scalar_lea.vmem %s2, %s222
        %p224 = scmp.eq.s32.totalorder %s24, 0
        // Predicated region
        $region37: #{criterion_loss.1} parent=27 // pred_check
          %p225 = pneg %p224
        $region38: #{criterion_loss.1} parent=27 // pred_check_branch
          %227 = sbr.rel (%p225) target = $region40
        $region39: #{criterion_loss.1} parent=27 // pred_region
          %vm228 = vcmask 130048
          %229 = vst.msk [vmem:[#allocation2] sm:$0xff] %vm228, 0.0
          %230 = vst.msk [vmem:[#allocation2 + $0x8] sm:$0xff] %vm228, 0.0
          %231 = vst.msk [vmem:[#allocation3] sm:$0xff] %vm228, 0.0
          %232 = vst.msk [vmem:[#allocation3 + $0x8] sm:$0xff] %vm228, 0.0
          %233 = vst.msk [vmem:[#allocation3 + $0x10] sm:$0xff] %vm228, 0.0
          %234 = vst.msk [vmem:[#allocation3 + $0x18] sm:$0xff] %vm228, 0.0
          %235 = vst.msk [vmem:[#allocation4] sm:$0xff] %vm228, 0.0
          %236 = vst.msk [vmem:[#allocation4 + $0x8] sm:$0xff] %vm228, 0.0
          %237 = vst.msk [vmem:[#allocation4 + $0x10] sm:$0xff] %vm228, 0.0
          %238 = vst.msk [vmem:[#allocation4 + $0x18] sm:$0xff] %vm228, 0.0
          %239 = vst.msk [vmem:[#allocation5] sm:$0xff] %vm228, 0.0
          %240 = vst.msk [vmem:[#allocation5 + $0x8] sm:$0xff] %vm228, 0.0
          %241 = vst.msk [vmem:[#allocation5 + $0x10] sm:$0xff] %vm228, 0.0
          %242 = vst.msk [vmem:[#allocation5 + $0x18] sm:$0xff] %vm228, 0.0
        $region40: #{criterion_loss.1} parent=27 // pred_fallthru
          _
        %v243 = vld [vmem:[%s184] sm:$0xff]
        %v244 = vld [vmem:[%s184 + $0x8] sm:$0xff]
        %s245 = scalar_lea.vmem %s184, 16 [#allocation6]
        %v246 = vld [vmem:[%s245] sm:$0xff]
        %v247 = vld [vmem:[%s245 + $0x8] sm:$0xff]
        %v248 = vld [vmem:[%s193] sm:$0xff]
        %v249 = vld [vmem:[%s193 + $0x8] sm:$0xff]
        %v250 = vmax.f32 %v243, %v246
        %v251 = vmax.f32 %v244, %v247
        %v252 = vsub.f32 %v243, %v250
        %v253 = vsub.f32 %v244, %v251
        %v254 = vmul.f32 %v252, 1.442695
        %v255 = vpow.pop %v254
        %v256 = vmul.f32 %v253, 1.442695
        %v257 = vpow.pop %v256
        %v258 = vsub.f32 %v246, %v250
        %v259 = vsub.f32 %v247, %v251
        %v260 = vmul.f32 %v258, 1.442695
        %v261 = vpow.pop %v260
        %v262 = vmul.f32 %v259, 1.442695
        %v263 = vpow.pop %v262
        %v264 = vadd.f32 %v255, %v261
        %v265 = vadd.f32 %v257, %v263
        %v266 = vlog2.pop %v264
        %v267 = vmul.f32 %v266, 0.6931472
        %v268 = vlog2.pop %v265
        %v269 = vmul.f32 %v268, 0.6931472
        %v270 = vadd.f32 %v250, %v267
        %v271 = vadd.f32 %v251, %v269
        %vm272 = vcmp.eq.s32.totalorder %v248, 0
        %vm273 = vcmp.eq.s32.totalorder %v249, 0
        %v274 = vsel %vm272, %v243, 0.0
        %v275 = vsel %vm273, %v244, 0.0
        %vm276 = vcmp.eq.s32.totalorder %v248, 1
        %vm277 = vcmp.eq.s32.totalorder %v249, 1
        %v278 = vsel %vm276, %v246, 0.0
        %v279 = vsel %vm277, %v247, 0.0
        %v280 = vadd.f32 %v274, %v278
        %v281 = vadd.f32 %v275, %v279
        %v282 = vsub.f32 %v270, %v280
        %v283 = vsub.f32 %v271, %v281
        %v284 = vld [vmem:[#allocation2] sm:$0xff]
        %v285 = vld [vmem:[#allocation2 + $0x8] sm:$0xff]
        %v286 = vadd.f32 %v284, %v282
        %v287 = vadd.f32 %v285, %v283
        %vm288 = vcmask 130048
        %289 = vst.msk [vmem:[#allocation2] sm:$0xff] %vm288, %v286
        %290 = vst.msk [vmem:[#allocation2 + $0x8] sm:$0xff] %vm288, %v287
        %vm291 = vcmp.eq.f32.partialorder %v246, %v250
        %vm292 = vcmp.eq.f32.partialorder %v247, %v251
        %v293 = vsel %vm291, 1, 0
        %v294 = vsel %vm292, 1, 0
        %vm295 = vcmp.eq.f32.partialorder %v243, %v250
        %vm296 = vcmp.eq.f32.partialorder %v244, %v251
        %v297 = vsel %vm295, 0, %v293
        %v298 = vsel %vm296, 0, %v294
        %vm299 = vcmp.eq.s32.totalorder %v297, %v248
        %vm300 = vcmp.eq.s32.totalorder %v298, %v249
        %v301 = vsel %vm272, 1, 0
        %v302 = vsel %vm273, 1, 0
        %v303 = vcvt.s32.f32 %v301
        %v304 = vcvt.s32.f32 %v302
        %vm305 = vcmp.eq.s32.totalorder %v297, 0
        %vm306 = vcmp.eq.s32.totalorder %v298, 0
        %v307 = vsel %vm305, 1, 0
        %v308 = vsel %vm306, 1, 0
        %v309 = vcvt.s32.f32 %v307
        %v310 = vcvt.s32.f32 %v308
        %v311 = vld [vmem:[#allocation3] sm:$0xff]
        %v312 = vld [vmem:[#allocation3 + $0x8] sm:$0xff]
        %v313 = vsel %vm299, %v303, 0.0
        %v314 = vsel %vm300, %v304, 0.0
        %v315 = vadd.f32 %v311, %v313
        %v316 = vadd.f32 %v312, %v314
        %317 = vst.msk [vmem:[#allocation3] sm:$0xff] %vm288, %v315
        %318 = vst.msk [vmem:[#allocation3 + $0x8] sm:$0xff] %vm288, %v316
        %v319 = vld [vmem:[#allocation4] sm:$0xff]
        %v320 = vld [vmem:[#allocation4 + $0x8] sm:$0xff]
        %v321 = vadd.f32 %v319, %v309
        %v322 = vadd.f32 %v320, %v310
        %323 = vst.msk [vmem:[#allocation4] sm:$0xff] %vm288, %v321
        %324 = vst.msk [vmem:[#allocation4 + $0x8] sm:$0xff] %vm288, %v322
        %v325 = vld [vmem:[#allocation5] sm:$0xff]
        %v326 = vld [vmem:[#allocation5 + $0x8] sm:$0xff]
        %v327 = vadd.f32 %v325, %v303
        %v328 = vadd.f32 %v326, %v304
        %329 = vst.msk [vmem:[#allocation5] sm:$0xff] %vm288, %v327
        %330 = vst.msk [vmem:[#allocation5 + $0x8] sm:$0xff] %vm288, %v328
        %v331 = vsel %vm276, 1, 0
        %v332 = vsel %vm277, 1, 0
        %v333 = vcvt.s32.f32 %v331
        %v334 = vcvt.s32.f32 %v332
        %vm335 = vcmp.eq.s32.totalorder %v297, 1
        %vm336 = vcmp.eq.s32.totalorder %v298, 1
        %v337 = vsel %vm335, 1, 0
        %v338 = vsel %vm336, 1, 0
        %v339 = vcvt.s32.f32 %v337
        %v340 = vcvt.s32.f32 %v338
        %s341 = scalar_lea.vmem [#allocation3], 16
        %v342 = vld [vmem:[%s341] sm:$0xff]
        %v343 = vld [vmem:[%s341 + $0x8] sm:$0xff]
        %v344 = vsel %vm299, %v333, 0.0
        %v345 = vsel %vm300, %v334, 0.0
        %v346 = vadd.f32 %v342, %v344
        %v347 = vadd.f32 %v343, %v345
        %348 = vst.msk [vmem:[%s341] sm:$0xff] %vm288, %v346
        %349 = vst.msk [vmem:[%s341 + $0x8] sm:$0xff] %vm288, %v347
        %s350 = scalar_lea.vmem [#allocation4], 16
        %v351 = vld [vmem:[%s350] sm:$0xff]
        %v352 = vld [vmem:[%s350 + $0x8] sm:$0xff]
        %v353 = vadd.f32 %v351, %v339
        %v354 = vadd.f32 %v352, %v340
        %355 = vst.msk [vmem:[%s350] sm:$0xff] %vm288, %v353
        %356 = vst.msk [vmem:[%s350 + $0x8] sm:$0xff] %vm288, %v354
        %s357 = scalar_lea.vmem [#allocation5], 16
        %v358 = vld [vmem:[%s357] sm:$0xff]
        %v359 = vld [vmem:[%s357 + $0x8] sm:$0xff]
        %v360 = vadd.f32 %v358, %v333
        %v361 = vadd.f32 %v359, %v334
        %362 = vst.msk [vmem:[%s357] sm:$0xff] %vm288, %v360
        %363 = vst.msk [vmem:[%s357 + $0x8] sm:$0xff] %vm288, %v361
        // Predicated region
        $region41: #{criterion_loss.1} parent=27 // pred_check
          %p364 = pneg %p224
        $region42: #{criterion_loss.1} parent=27 // pred_check_branch
          %366 = sbr.rel (%p364) target = $region44
        $region43: #{criterion_loss.1} parent=27 // pred_region
          %v367 = vld [vmem:[#allocation2] sm:$0xff]
          %v368 = vld [vmem:[#allocation2 + $0x8] sm:$0xff]
          %v369 = vsel %vm288, %v367, 0.0
          %v370 = vsel %vm288, %v368, 0.0
          %v371 = vadd.f32 %v369, %v370
          %372 = vadd.xlane.f32.xlu0 %v371
          %v373 = vpop.xlane.xlu0 %372
          %v374 = vrot.slane %v373, 4
          %v375 = vadd.f32 %v373, %v374
          %v376 = vrot.slane %v375, 2
          %v377 = vadd.f32 %v375, %v376
          %v378 = vrot.slane %v377, 1
          %v379 = vadd.f32 %v377, %v378
          %s380 = vtos %v379
          %v381 = vld [vmem:[#allocation3] sm:$0xff]
          %v382 = vld [vmem:[#allocation3 + $0x8] sm:$0xff]
          %v383 = vsel %vm288, %v381, 0.0
          %v384 = vsel %vm288, %v382, 0.0
          %v385 = vadd.f32 %v383, %v384
          %386 = vadd.xlane.f32.xlu0 %v385
          %v387 = vpop.xlane.xlu0 %386
          %v388 = vrot.slane %v387, 4
          %v389 = vadd.f32 %v387, %v388
          %v390 = vrot.slane %v389, 2
          %v391 = vadd.f32 %v389, %v390
          %v392 = vrot.slane %v391, 1
          %v393 = vadd.f32 %v391, %v392
          %s394 = vtos %v393
          %v395 = vld [vmem:[%s341] sm:$0xff]
          %v396 = vld [vmem:[%s341 + $0x8] sm:$0xff]
          %v397 = vsel %vm288, %v395, 0.0
          %v398 = vsel %vm288, %v396, 0.0
          %v399 = vadd.f32 %v397, %v398
          %400 = vadd.xlane.f32.xlu0 %v399
          %v401 = vpop.xlane.xlu0 %400
          %v402 = vrot.slane %v401, 4
          %v403 = vadd.f32 %v401, %v402
          %v404 = vrot.slane %v403, 2
          %v405 = vadd.f32 %v403, %v404
          %v406 = vrot.slane %v405, 1
          %v407 = vadd.f32 %v405, %v406
          %s408 = vtos %v407
          %v409 = vld [vmem:[#allocation4] sm:$0xff]
          %v410 = vld [vmem:[#allocation4 + $0x8] sm:$0xff]
          %v411 = vsel %vm288, %v409, 0.0
          %v412 = vsel %vm288, %v410, 0.0
          %v413 = vadd.f32 %v411, %v412
          %414 = vadd.xlane.f32.xlu0 %v413
          %v415 = vpop.xlane.xlu0 %414
          %v416 = vrot.slane %v415, 4
          %v417 = vadd.f32 %v415, %v416
          %v418 = vrot.slane %v417, 2
          %v419 = vadd.f32 %v417, %v418
          %v420 = vrot.slane %v419, 1
          %v421 = vadd.f32 %v419, %v420
          %s422 = vtos %v421
          %v423 = vld [vmem:[%s350] sm:$0xff]
          %v424 = vld [vmem:[%s350 + $0x8] sm:$0xff]
          %v425 = vsel %vm288, %v423, 0.0
          %v426 = vsel %vm288, %v424, 0.0
          %v427 = vadd.f32 %v425, %v426
          %428 = vadd.xlane.f32.xlu0 %v427
          %v429 = vpop.xlane.xlu0 %428
          %v430 = vrot.slane %v429, 4
          %v431 = vadd.f32 %v429, %v430
          %v432 = vrot.slane %v431, 2
          %v433 = vadd.f32 %v431, %v432
          %v434 = vrot.slane %v433, 1
          %v435 = vadd.f32 %v433, %v434
          %s436 = vtos %v435
          %v437 = vld [vmem:[#allocation5] sm:$0xff]
          %v438 = vld [vmem:[#allocation5 + $0x8] sm:$0xff]
          %v439 = vsel %vm288, %v437, 0.0
          %v440 = vsel %vm288, %v438, 0.0
          %v441 = vadd.f32 %v439, %v440
          %442 = vadd.xlane.f32.xlu0 %v441
          %v443 = vpop.xlane.xlu0 %442
          %v444 = vrot.slane %v443, 4
          %v445 = vadd.f32 %v443, %v444
          %v446 = vrot.slane %v445, 2
          %v447 = vadd.f32 %v445, %v446
          %v448 = vrot.slane %v447, 1
          %v449 = vadd.f32 %v447, %v448
          %s450 = vtos %v449
          %v451 = vld [vmem:[%s357] sm:$0xff]
          %v452 = vld [vmem:[%s357 + $0x8] sm:$0xff]
          %v453 = vsel %vm288, %v451, 0.0
          %v454 = vsel %vm288, %v452, 0.0
          %v455 = vadd.f32 %v453, %v454
          %456 = vadd.xlane.f32.xlu0 %v455
          %v457 = vpop.xlane.xlu0 %456
          %v458 = vrot.slane %v457, 4
          %v459 = vadd.f32 %v457, %v458
          %v460 = vrot.slane %v459, 2
          %v461 = vadd.f32 %v459, %v460
          %v462 = vrot.slane %v461, 1
          %v463 = vadd.f32 %v461, %v462
          %s464 = vtos %v463
          %v465 = vlaneseq
          %v466 = vand.u32 %v465, 127
          %v467 = vlaneseq
          %v468 = vshrl.u32 %v467, 7
          %vm469 = vcmp.eq.s32.totalorder %v468, 0
          %vm470 = vcmp.eq.s32.totalorder %v466, 0
          %vm471 = vmand %vm469, %vm470
          %v472 = vstv %s380
          %v473 = vsel %vm471, %v472, 0.0
          %vm474 = vcmp.eq.s32.totalorder %v466, 1
          %vm475 = vmand %vm469, %vm474
          %v476 = vstv %s394
          %v477 = vsel %vm475, %v476, %v473
          %vm478 = vcmp.eq.s32.totalorder %v466, 2
          %vm479 = vmand %vm469, %vm478
          %v480 = vstv %s408
          %v481 = vsel %vm479, %v480, %v477
          %vm482 = vcmp.eq.s32.totalorder %v466, 3
          %vm483 = vmand %vm469, %vm482
          %v484 = vstv %s422
          %v485 = vsel %vm483, %v484, %v481
          %vm486 = vcmp.eq.s32.totalorder %v466, 4
          %vm487 = vmand %vm469, %vm486
          %v488 = vstv %s436
          %v489 = vsel %vm487, %v488, %v485
          %vm490 = vcmp.eq.s32.totalorder %v466, 5
          %vm491 = vmand %vm469, %vm490
          %v492 = vstv %s450
          %v493 = vsel %vm491, %v492, %v489
          %vm494 = vcmp.eq.s32.totalorder %v466, 6
          %vm495 = vmand %vm469, %vm494
          %v496 = vstv %s464
          %v497 = vsel %vm495, %v496, %v493
          %498 = vst [vmem:[%s223] sm:$0xff] %v497
        $region44: #{criterion_loss.1} parent=27 // pred_fallthru
          _
        %p499 = scmp.lt.s32.totalorder %s23, 1
        %s500 = scalar_select %p499, %s23, 1
        %s501 = smul.addr %s500, 8
        %s502 = scalar_lea.vmem %s2, %s501
        // Predicated region
        $region45: #{criterion_loss.1} parent=27 // pred_check
          %p503 = pneg %p105
        $region46: #{criterion_loss.1} parent=27 // pred_check_branch
          %505 = sbr.rel (%p503) target = $region48
        $region47: #{criterion_loss.1} parent=27 // pred_region
          _
        $region48: #{criterion_loss.1} parent=27 // pred_fallthru
          _
      $region28: #{criterion_loss.1} parent=5 // pred_fallthru
        _
      %p506 = scmp.le.s32.totalorder 2, %s14
      // Predicated region
      $region49: #{criterion_loss.1} parent=5 // pred_check
        %p507 = pneg %p506
      $region50: #{criterion_loss.1} parent=5 // pred_check_branch
        %509 = sbr.rel (%p507) target = $region52
      $region51: #{criterion_loss.1} parent=5 // pred_region
        %s510 = ssub.s32 %s14, 2
        // Predicated region
        $region53: #{criterion_loss.1} parent=51 // pred_check
          %p511 = pneg %p111
        $region54: #{criterion_loss.1} parent=51 // pred_check_branch
          %513 = sbr.rel (%p511) target = $region56
        $region55: #{criterion_loss.1} parent=51 // pred_region
          %p514 = scmp.lt.s32.totalorder %s25, 1
          %s515 = scalar_select %p514, %s25, 1
          %s516 = smul.addr %s515, 8
          %s517 = scalar_lea.vmem %s2, %s516
        $region56: #{criterion_loss.1} parent=51 // pred_fallthru
          _
      $region52: #{criterion_loss.1} parent=5 // pred_fallthru
        _
    $region6: #{criterion_loss.1} parent=1 // loop_footer
      %s18 = sadd.s32 1, %s14
    $region7: #{criterion_loss.1} parent=1 // loop_footer_branch
      %13 = sbr.rel target = $region3
    $region8: #{criterion_loss.1} parent=1 // loop_exit
      _
    %518 = vsyncpa [#allocation7], 1
    %s519 = scalar_lea.sflag [#allocation7], 1
    %520 = vsyncpa %s519, 1
    %521 = vsyncpa [#allocation9], 1
    %s522 = scalar_lea.sflag [#allocation9], 1
    %523 = vsyncpa %s522, 1

</llo_original>
